<compile_context>
chip_gen: v7x
topology: tpu7x:2x2x1
jax: 0.10.0
libtpu: 0.0.40
codegen_flags: <defaults>
</compile_context>

<pallas_src>
import functools

import jax
import jax.numpy as jnp
from jax import lax
from jax.experimental import pallas as pl
from jax.experimental.pallas import tpu as pltpu


def _conv3x3_lrelu_kernel(x_ref, w_ref, b_ref, m_ref, o_ref, *, width):
    """One image per grid step.

    x_ref : (1, Cin, HW)   input image, spatial flattened (lane-dense)
    w_ref : (Cout, 9*Cin)  weight columns; column k = (dy*3+dx)*Cin + ci
    b_ref : (Cout, 1)      bias
    m_ref : (9, HW)        per-tap 0/1 validity masks (implements padding=1)
    o_ref : (1, Cout, HW)  output image
    """
    _, cin, hw = x_ref.shape
    cout = o_ref.shape[1]
    f32 = jnp.float32

    x = x_ref[0].astype(f32)          # (Cin, HW) -- whole image in vregs
    w_all = w_ref[...].astype(f32)    # (Cout, 9*Cin) -- a single vreg

    # Bias folded into the register-resident accumulator init.
    acc = jnp.broadcast_to(b_ref[...].astype(f32), (cout, hw))

    # 3x3 taps.  For output pixel p (= h*W + w, flattened) tap (dy, dx) reads
    # x[p + (dy-1)*W + (dx-1)]: realized as one lane-roll of the whole image
    # plus an edge mask (out-of-image -> 0), then Cin broadcast-FMAs.
    # Wrapped (mod HW) positions of the roll always fall on masked pixels.
    # TODO(synk): for Cin/Cout >= ~32 switch the per-tap channel reduction to
    # an MXU matmul ((Cout,Cin) @ (Cin,HW)); at 4->8 channels the VPU is the
    # right unit and the MXU would be <3% utilized.
    for dy in range(3):
        for dx in range(3):
            tap = dy * 3 + dx
            off = (dy - 1) * width + (dx - 1)
            if off == 0:
                rolled = x                                  # center tap, no shift
            else:
                # result[p] = x[(p + off) mod HW]
                rolled = pltpu.roll(x, shift=(-off) % hw, axis=1)
            contrib = None
            for ci in range(cin):
                k = tap * cin + ci
                w_col = w_all[:, k:k + 1]                   # (Cout, 1)
                term = w_col * rolled[ci:ci + 1, :]         # (Cout, HW) broadcast FMA
                contrib = term if contrib is None else contrib + term
            if off == 0:
                acc = acc + contrib                         # center tap always valid
            else:
                acc = acc + contrib * m_ref[pl.ds(tap, 1), :]

    # LeakyReLU (PyTorch default negative_slope = 0.01).
    y = jnp.where(acc > 0, acc, 0.01 * acc)
    o_ref[0] = y.astype(o_ref.dtype)


def _tap_masks(H, W):
    """(9, H*W) float32 0/1 masks: 1 where tap (dy, dx) reads inside the image."""
    pos = jnp.arange(H * W, dtype=jnp.int32)
    row, col = pos // W, pos % W
    masks = []
    for dy in range(3):
        for dx in range(3):
            ok = jnp.ones((H * W,), dtype=bool)
            if dy == 0:
                ok = ok & (row > 0)
            elif dy == 2:
                ok = ok & (row < H - 1)
            if dx == 0:
                ok = ok & (col > 0)
            elif dx == 2:
                ok = ok & (col < W - 1)
            masks.append(ok)
    return jnp.stack(masks, axis=0).astype(jnp.float32)


def _vmem_capacity_bytes():
    # Derive the budget from the actual chip (v5e/v6e: 128 MiB, v7x: 64 MiB/TC).
    try:
        return int(pltpu.get_tpu_info().vmem_capacity_bytes)
    except Exception:
        return 64 * 1024 * 1024   # conservative fallback (v7x per-TC physical)


def conv3x3_block(x_nchw, weight, bias):
    """Conv2d(3x3, stride 1, pad 1) + LeakyReLU(0.01); NCHW in / NCHW out.

    x_nchw : (N, Cin, H, W)    float32
    weight : (Cout, Cin, 3, 3) float32 (PyTorch OIHW layout)
    bias   : (Cout,)           float32
    returns (N, Cout, H, W)    float32
    """
    N, Cin, H, W = x_nchw.shape
    Cout = weight.shape[0]
    assert weight.shape == (Cout, Cin, 3, 3)
    HW = H * W

    # VMEM accounting: 2x (double-buffered) input + output blocks + constants.
    need = 2 * 4 * HW * (Cin + Cout) + 2 * 4 * (Cout * 9 * Cin + Cout + 9 * HW)
    cap = _vmem_capacity_bytes()
    if need + (2 << 20) > cap:
        # TODO(synk): add an H-tiled (halo) path for images whose per-image
        # working set exceeds VMEM; unnecessary for this module's sizes.
        raise NotImplementedError("image too large for whole-image-per-step kernel")
    vmem_limit = int(min(cap, max(4 * need, 16 * 1024 * 1024)))

    # Free, contiguous relayouts in the wrapper (no HBM pad / transpose passes).
    x_flat = x_nchw.reshape(N, Cin, HW)
    w_cols = jnp.transpose(weight, (0, 2, 3, 1)).reshape(Cout, 9 * Cin)
    b_col = bias.reshape(Cout, 1)
    masks = _tap_masks(H, W)

    kernel = functools.partial(_conv3x3_lrelu_kernel, width=W)

    # NOTE: for N == 1 on v7x one could split Cout (or spatial) into 2 groups
    # so both TensorCores get a step; with N >= 2 the batch axis already does.
    out_flat = pl.pallas_call(
        kernel,
        out_shape=jax.ShapeDtypeStruct((N, Cout, HW), x_nchw.dtype),
        grid_spec=pltpu.PrefetchScalarGridSpec(
            num_scalar_prefetch=0,
            grid=(N,),
            in_specs=[
                pl.BlockSpec((1, Cin, HW), lambda n: (n, 0, 0)),     # image n
                pl.BlockSpec((Cout, 9 * Cin), lambda n: (0, 0)),     # weights
                pl.BlockSpec((Cout, 1), lambda n: (0, 0)),           # bias
                pl.BlockSpec((9, HW), lambda n: (0, 0)),             # edge masks
            ],
            out_specs=pl.BlockSpec((1, Cout, HW), lambda n: (n, 0, 0)),
        ),
        compiler_params=pltpu.CompilerParams(
            dimension_semantics=("parallel",),
            vmem_limit_bytes=vmem_limit,
        ),
    )(x_flat, w_cols, b_col, masks)

    return out_flat.reshape(N, Cout, H, W)


def _reference(x_nchw, weight, bias):
    # Pure-JAX reference: NCHW conv (stride 1, pad 1) + LeakyReLU(0.01).
    y = lax.conv_general_dilated(
        x_nchw, weight,
        window_strides=(1, 1),
        padding=((1, 1), (1, 1)),
        dimension_numbers=("NCHW", "OIHW", "NCHW"),
    )
    y = y + bias[None, :, None, None]
    return jnp.where(y > 0, y, 0.01 * y)


if __name__ == "__main__":
    key = jax.random.PRNGKey(0)
    k_x, k_w, k_b = jax.random.split(key, 3)

    N, Cin, H, W = 2, 4, 16, 16
    Cout = 8

    x = jax.random.normal(k_x, (N, Cin, H, W), dtype=jnp.float32)
    # Deterministic synthetic parameters (kaiming-uniform-ish bound, like nn.Conv2d).
    fan_in = Cin * 3 * 3
    bound = 1.0 / (fan_in ** 0.5)
    weight = jax.random.uniform(k_w, (Cout, Cin, 3, 3), jnp.float32, -bound, bound)
    bias = jax.random.uniform(k_b, (Cout,), jnp.float32, -bound, bound)

    out = conv3x3_block(x, weight, bias)
    out = jax.block_until_ready(out)

    ref = _reference(x, weight, bias)
    assert out.shape == (N, Cout, H, W)
    assert jnp.allclose(out, ref, atol=1e-4, rtol=1e-4), "mismatch vs reference conv"

    print("KERNEL_OK")
</pallas_src>

<mosaic_0001>
module attributes {stable_mosaic.version = 11 : i64} {
  func.func @_conv3x3_lrelu_kernel(%arg0: i32, %arg1: memref<1x4x256xf32, #tpu.memory_space<vmem>>, %arg2: memref<8x36xf32, #tpu.memory_space<vmem>>, %arg3: memref<8x1xf32, #tpu.memory_space<vmem>>, %arg4: memref<9x256xf32, #tpu.memory_space<vmem>>, %arg5: memref<1x8x256xf32, #tpu.memory_space<vmem>>) attributes {dimension_semantics = [#tpu.dimension_semantics<parallel>], iteration_bounds = array<i64: 2>, scalar_prefetch = 0 : i64, scratch_operands = 0 : i64, tpu.core_type = #tpu.core_type<tc>, window_params = [{transform_indices = @transform_0, window_bounds = array<i64: 1, 4, 256>}, {pipeline_mode = #tpu.pipeline_mode<synchronous>, transform_indices = @transform_1, window_bounds = array<i64: 8, 36>}, {pipeline_mode = #tpu.pipeline_mode<synchronous>, transform_indices = @transform_2, window_bounds = array<i64: 8, 1>}, {pipeline_mode = #tpu.pipeline_mode<synchronous>, transform_indices = @transform_3, window_bounds = array<i64: 9, 256>}, {transform_indices = @transform_4, window_bounds = array<i64: 1, 8, 256>}]} {
    %c0 = arith.constant 0 : index
    %c0_0 = arith.constant 0 : index
    %c0_1 = arith.constant 0 : index
    %0 = vector.load %arg1[%c0, %c0_0, %c0_1] : memref<1x4x256xf32, #tpu.memory_space<vmem>>, vector<1x4x256xf32>
    %1 = vector.shape_cast %0 : vector<1x4x256xf32> to vector<4x256xf32>
    %c0_2 = arith.constant 0 : index
    %c0_3 = arith.constant 0 : index
    %2 = vector.load %arg2[%c0_2, %c0_3] : memref<8x36xf32, #tpu.memory_space<vmem>>, vector<8x36xf32>
    %c0_4 = arith.constant 0 : index
    %c0_5 = arith.constant 0 : index
    %3 = vector.load %arg3[%c0_4, %c0_5] : memref<8x1xf32, #tpu.memory_space<vmem>>, vector<8x1xf32>
    %4 = vector.shape_cast %3 : vector<8x1xf32> to vector<8x1xf32>
    %5 = vector.broadcast %4 : vector<8x1xf32> to vector<8x256xf32>
    %c17_i32 = arith.constant 17 : i32
    %6 = tpu.dynamic_rotate %1 by %c17_i32 dim 1 : vector<4x256xf32>, i32 -> vector<4x256xf32>
    %7 = vector.extract_strided_slice %2 {offsets = [0, 0], sizes = [8, 1], strides = [1, 1]} : vector<8x36xf32> to vector<8x1xf32>
    %8 = vector.extract_strided_slice %6 {offsets = [0, 0], sizes = [1, 256], strides = [1, 1]} : vector<4x256xf32> to vector<1x256xf32>
    %9 = vector.broadcast %7 : vector<8x1xf32> to vector<8x256xf32>
    %10 = vector.broadcast %8 : vector<1x256xf32> to vector<8x256xf32>
    %11 = arith.mulf %9, %10 : vector<8x256xf32>
    %12 = vector.extract_strided_slice %2 {offsets = [0, 1], sizes = [8, 1], strides = [1, 1]} : vector<8x36xf32> to vector<8x1xf32>
    %13 = vector.extract_strided_slice %6 {offsets = [1, 0], sizes = [1, 256], strides = [1, 1]} : vector<4x256xf32> to vector<1x256xf32>
    %14 = vector.broadcast %12 : vector<8x1xf32> to vector<8x256xf32>
    %15 = vector.broadcast %13 : vector<1x256xf32> to vector<8x256xf32>
    %16 = arith.mulf %14, %15 : vector<8x256xf32>
    %17 = arith.addf %11, %16 : vector<8x256xf32>
    %18 = vector.extract_strided_slice %2 {offsets = [0, 2], sizes = [8, 1], strides = [1, 1]} : vector<8x36xf32> to vector<8x1xf32>
    %19 = vector.extract_strided_slice %6 {offsets = [2, 0], sizes = [1, 256], strides = [1, 1]} : vector<4x256xf32> to vector<1x256xf32>
    %20 = vector.broadcast %18 : vector<8x1xf32> to vector<8x256xf32>
    %21 = vector.broadcast %19 : vector<1x256xf32> to vector<8x256xf32>
    %22 = arith.mulf %20, %21 : vector<8x256xf32>
    %23 = arith.addf %17, %22 : vector<8x256xf32>
    %24 = vector.extract_strided_slice %2 {offsets = [0, 3], sizes = [8, 1], strides = [1, 1]} : vector<8x36xf32> to vector<8x1xf32>
    %25 = vector.extract_strided_slice %6 {offsets = [3, 0], sizes = [1, 256], strides = [1, 1]} : vector<4x256xf32> to vector<1x256xf32>
    %26 = vector.broadcast %24 : vector<8x1xf32> to vector<8x256xf32>
    %27 = vector.broadcast %25 : vector<1x256xf32> to vector<8x256xf32>
    %28 = arith.mulf %26, %27 : vector<8x256xf32>
    %29 = arith.addf %23, %28 : vector<8x256xf32>
    %c0_6 = arith.constant 0 : index
    %c0_7 = arith.constant 0 : index
    %30 = vector.load %arg4[%c0_6, %c0_7] : memref<9x256xf32, #tpu.memory_space<vmem>>, vector<1x256xf32>
    %31 = vector.broadcast %30 : vector<1x256xf32> to vector<8x256xf32>
    %32 = arith.mulf %29, %31 : vector<8x256xf32>
    %33 = arith.addf %5, %32 : vector<8x256xf32>
    %c16_i32 = arith.constant 16 : i32
    %34 = tpu.dynamic_rotate %1 by %c16_i32 dim 1 : vector<4x256xf32>, i32 -> vector<4x256xf32>
    %35 = vector.extract_strided_slice %2 {offsets = [0, 4], sizes = [8, 1], strides = [1, 1]} : vector<8x36xf32> to vector<8x1xf32>
    %36 = vector.extract_strided_slice %34 {offsets = [0, 0], sizes = [1, 256], strides = [1, 1]} : vector<4x256xf32> to vector<1x256xf32>
    %37 = vector.broadcast %35 : vector<8x1xf32> to vector<8x256xf32>
    %38 = vector.broadcast %36 : vector<1x256xf32> to vector<8x256xf32>
    %39 = arith.mulf %37, %38 : vector<8x256xf32>
    %40 = vector.extract_strided_slice %2 {offsets = [0, 5], sizes = [8, 1], strides = [1, 1]} : vector<8x36xf32> to vector<8x1xf32>
    %41 = vector.extract_strided_slice %34 {offsets = [1, 0], sizes = [1, 256], strides = [1, 1]} : vector<4x256xf32> to vector<1x256xf32>
    %42 = vector.broadcast %40 : vector<8x1xf32> to vector<8x256xf32>
    %43 = vector.broadcast %41 : vector<1x256xf32> to vector<8x256xf32>
    %44 = arith.mulf %42, %43 : vector<8x256xf32>
    %45 = arith.addf %39, %44 : vector<8x256xf32>
    %46 = vector.extract_strided_slice %2 {offsets = [0, 6], sizes = [8, 1], strides = [1, 1]} : vector<8x36xf32> to vector<8x1xf32>
    %47 = vector.extract_strided_slice %34 {offsets = [2, 0], sizes = [1, 256], strides = [1, 1]} : vector<4x256xf32> to vector<1x256xf32>
    %48 = vector.broadcast %46 : vector<8x1xf32> to vector<8x256xf32>
    %49 = vector.broadcast %47 : vector<1x256xf32> to vector<8x256xf32>
    %50 = arith.mulf %48, %49 : vector<8x256xf32>
    %51 = arith.addf %45, %50 : vector<8x256xf32>
    %52 = vector.extract_strided_slice %2 {offsets = [0, 7], sizes = [8, 1], strides = [1, 1]} : vector<8x36xf32> to vector<8x1xf32>
    %53 = vector.extract_strided_slice %34 {offsets = [3, 0], sizes = [1, 256], strides = [1, 1]} : vector<4x256xf32> to vector<1x256xf32>
    %54 = vector.broadcast %52 : vector<8x1xf32> to vector<8x256xf32>
    %55 = vector.broadcast %53 : vector<1x256xf32> to vector<8x256xf32>
    %56 = arith.mulf %54, %55 : vector<8x256xf32>
    %57 = arith.addf %51, %56 : vector<8x256xf32>
    %c1 = arith.constant 1 : index
    %c0_8 = arith.constant 0 : index
    %58 = vector.load %arg4[%c1, %c0_8] : memref<9x256xf32, #tpu.memory_space<vmem>>, vector<1x256xf32>
    %59 = vector.broadcast %58 : vector<1x256xf32> to vector<8x256xf32>
    %60 = arith.mulf %57, %59 : vector<8x256xf32>
    %61 = arith.addf %33, %60 : vector<8x256xf32>
    %c15_i32 = arith.constant 15 : i32
    %62 = tpu.dynamic_rotate %1 by %c15_i32 dim 1 : vector<4x256xf32>, i32 -> vector<4x256xf32>
    %63 = vector.extract_strided_slice %2 {offsets = [0, 8], sizes = [8, 1], strides = [1, 1]} : vector<8x36xf32> to vector<8x1xf32>
    %64 = vector.extract_strided_slice %62 {offsets = [0, 0], sizes = [1, 256], strides = [1, 1]} : vector<4x256xf32> to vector<1x256xf32>
    %65 = vector.broadcast %63 : vector<8x1xf32> to vector<8x256xf32>
    %66 = vector.broadcast %64 : vector<1x256xf32> to vector<8x256xf32>
    %67 = arith.mulf %65, %66 : vector<8x256xf32>
    %68 = vector.extract_strided_slice %2 {offsets = [0, 9], sizes = [8, 1], strides = [1, 1]} : vector<8x36xf32> to vector<8x1xf32>
    %69 = vector.extract_strided_slice %62 {offsets = [1, 0], sizes = [1, 256], strides = [1, 1]} : vector<4x256xf32> to vector<1x256xf32>
    %70 = vector.broadcast %68 : vector<8x1xf32> to vector<8x256xf32>
    %71 = vector.broadcast %69 : vector<1x256xf32> to vector<8x256xf32>
    %72 = arith.mulf %70, %71 : vector<8x256xf32>
    %73 = arith.addf %67, %72 : vector<8x256xf32>
    %74 = vector.extract_strided_slice %2 {offsets = [0, 10], sizes = [8, 1], strides = [1, 1]} : vector<8x36xf32> to vector<8x1xf32>
    %75 = vector.extract_strided_slice %62 {offsets = [2, 0], sizes = [1, 256], strides = [1, 1]} : vector<4x256xf32> to vector<1x256xf32>
    %76 = vector.broadcast %74 : vector<8x1xf32> to vector<8x256xf32>
    %77 = vector.broadcast %75 : vector<1x256xf32> to vector<8x256xf32>
    %78 = arith.mulf %76, %77 : vector<8x256xf32>
    %79 = arith.addf %73, %78 : vector<8x256xf32>
    %80 = vector.extract_strided_slice %2 {offsets = [0, 11], sizes = [8, 1], strides = [1, 1]} : vector<8x36xf32> to vector<8x1xf32>
    %81 = vector.extract_strided_slice %62 {offsets = [3, 0], sizes = [1, 256], strides = [1, 1]} : vector<4x256xf32> to vector<1x256xf32>
    %82 = vector.broadcast %80 : vector<8x1xf32> to vector<8x256xf32>
    %83 = vector.broadcast %81 : vector<1x256xf32> to vector<8x256xf32>
    %84 = arith.mulf %82, %83 : vector<8x256xf32>
    %85 = arith.addf %79, %84 : vector<8x256xf32>
    %c2 = arith.constant 2 : index
    %c0_9 = arith.constant 0 : index
    %86 = vector.load %arg4[%c2, %c0_9] : memref<9x256xf32, #tpu.memory_space<vmem>>, vector<1x256xf32>
    %87 = vector.broadcast %86 : vector<1x256xf32> to vector<8x256xf32>
    %88 = arith.mulf %85, %87 : vector<8x256xf32>
    %89 = arith.addf %61, %88 : vector<8x256xf32>
    %c1_i32 = arith.constant 1 : i32
    %90 = tpu.dynamic_rotate %1 by %c1_i32 dim 1 : vector<4x256xf32>, i32 -> vector<4x256xf32>
    %91 = vector.extract_strided_slice %2 {offsets = [0, 12], sizes = [8, 1], strides = [1, 1]} : vector<8x36xf32> to vector<8x1xf32>
    %92 = vector.extract_strided_slice %90 {offsets = [0, 0], sizes = [1, 256], strides = [1, 1]} : vector<4x256xf32> to vector<1x256xf32>
    %93 = vector.broadcast %91 : vector<8x1xf32> to vector<8x256xf32>
    %94 = vector.broadcast %92 : vector<1x256xf32> to vector<8x256xf32>
    %95 = arith.mulf %93, %94 : vector<8x256xf32>
    %96 = vector.extract_strided_slice %2 {offsets = [0, 13], sizes = [8, 1], strides = [1, 1]} : vector<8x36xf32> to vector<8x1xf32>
    %97 = vector.extract_strided_slice %90 {offsets = [1, 0], sizes = [1, 256], strides = [1, 1]} : vector<4x256xf32> to vector<1x256xf32>
    %98 = vector.broadcast %96 : vector<8x1xf32> to vector<8x256xf32>
    %99 = vector.broadcast %97 : vector<1x256xf32> to vector<8x256xf32>
    %100 = arith.mulf %98, %99 : vector<8x256xf32>
    %101 = arith.addf %95, %100 : vector<8x256xf32>
    %102 = vector.extract_strided_slice %2 {offsets = [0, 14], sizes = [8, 1], strides = [1, 1]} : vector<8x36xf32> to vector<8x1xf32>
    %103 = vector.extract_strided_slice %90 {offsets = [2, 0], sizes = [1, 256], strides = [1, 1]} : vector<4x256xf32> to vector<1x256xf32>
    %104 = vector.broadcast %102 : vector<8x1xf32> to vector<8x256xf32>
    %105 = vector.broadcast %103 : vector<1x256xf32> to vector<8x256xf32>
    %106 = arith.mulf %104, %105 : vector<8x256xf32>
    %107 = arith.addf %101, %106 : vector<8x256xf32>
    %108 = vector.extract_strided_slice %2 {offsets = [0, 15], sizes = [8, 1], strides = [1, 1]} : vector<8x36xf32> to vector<8x1xf32>
    %109 = vector.extract_strided_slice %90 {offsets = [3, 0], sizes = [1, 256], strides = [1, 1]} : vector<4x256xf32> to vector<1x256xf32>
    %110 = vector.broadcast %108 : vector<8x1xf32> to vector<8x256xf32>
    %111 = vector.broadcast %109 : vector<1x256xf32> to vector<8x256xf32>
    %112 = arith.mulf %110, %111 : vector<8x256xf32>
    %113 = arith.addf %107, %112 : vector<8x256xf32>
    %c3 = arith.constant 3 : index
    %c0_10 = arith.constant 0 : index
    %114 = vector.load %arg4[%c3, %c0_10] : memref<9x256xf32, #tpu.memory_space<vmem>>, vector<1x256xf32>
    %115 = vector.broadcast %114 : vector<1x256xf32> to vector<8x256xf32>
    %116 = arith.mulf %113, %115 : vector<8x256xf32>
    %117 = arith.addf %89, %116 : vector<8x256xf32>
    %118 = vector.extract_strided_slice %2 {offsets = [0, 16], sizes = [8, 1], strides = [1, 1]} : vector<8x36xf32> to vector<8x1xf32>
    %119 = vector.extract_strided_slice %1 {offsets = [0, 0], sizes = [1, 256], strides = [1, 1]} : vector<4x256xf32> to vector<1x256xf32>
    %120 = vector.broadcast %118 : vector<8x1xf32> to vector<8x256xf32>
    %121 = vector.broadcast %119 : vector<1x256xf32> to vector<8x256xf32>
    %122 = arith.mulf %120, %121 : vector<8x256xf32>
    %123 = vector.extract_strided_slice %2 {offsets = [0, 17], sizes = [8, 1], strides = [1, 1]} : vector<8x36xf32> to vector<8x1xf32>
    %124 = vector.extract_strided_slice %1 {offsets = [1, 0], sizes = [1, 256], strides = [1, 1]} : vector<4x256xf32> to vector<1x256xf32>
    %125 = vector.broadcast %123 : vector<8x1xf32> to vector<8x256xf32>
    %126 = vector.broadcast %124 : vector<1x256xf32> to vector<8x256xf32>
    %127 = arith.mulf %125, %126 : vector<8x256xf32>
    %128 = arith.addf %122, %127 : vector<8x256xf32>
    %129 = vector.extract_strided_slice %2 {offsets = [0, 18], sizes = [8, 1], strides = [1, 1]} : vector<8x36xf32> to vector<8x1xf32>
    %130 = vector.extract_strided_slice %1 {offsets = [2, 0], sizes = [1, 256], strides = [1, 1]} : vector<4x256xf32> to vector<1x256xf32>
    %131 = vector.broadcast %129 : vector<8x1xf32> to vector<8x256xf32>
    %132 = vector.broadcast %130 : vector<1x256xf32> to vector<8x256xf32>
    %133 = arith.mulf %131, %132 : vector<8x256xf32>
    %134 = arith.addf %128, %133 : vector<8x256xf32>
    %135 = vector.extract_strided_slice %2 {offsets = [0, 19], sizes = [8, 1], strides = [1, 1]} : vector<8x36xf32> to vector<8x1xf32>
    %136 = vector.extract_strided_slice %1 {offsets = [3, 0], sizes = [1, 256], strides = [1, 1]} : vector<4x256xf32> to vector<1x256xf32>
    %137 = vector.broadcast %135 : vector<8x1xf32> to vector<8x256xf32>
    %138 = vector.broadcast %136 : vector<1x256xf32> to vector<8x256xf32>
    %139 = arith.mulf %137, %138 : vector<8x256xf32>
    %140 = arith.addf %134, %139 : vector<8x256xf32>
    %141 = arith.addf %117, %140 : vector<8x256xf32>
    %c255_i32 = arith.constant 255 : i32
    %142 = tpu.dynamic_rotate %1 by %c255_i32 dim 1 : vector<4x256xf32>, i32 -> vector<4x256xf32>
    %143 = vector.extract_strided_slice %2 {offsets = [0, 20], sizes = [8, 1], strides = [1, 1]} : vector<8x36xf32> to vector<8x1xf32>
    %144 = vector.extract_strided_slice %142 {offsets = [0, 0], sizes = [1, 256], strides = [1, 1]} : vector<4x256xf32> to vector<1x256xf32>
    %145 = vector.broadcast %143 : vector<8x1xf32> to vector<8x256xf32>
    %146 = vector.broadcast %144 : vector<1x256xf32> to vector<8x256xf32>
    %147 = arith.mulf %145, %146 : vector<8x256xf32>
    %148 = vector.extract_strided_slice %2 {offsets = [0, 21], sizes = [8, 1], strides = [1, 1]} : vector<8x36xf32> to vector<8x1xf32>
    %149 = vector.extract_strided_slice %142 {offsets = [1, 0], sizes = [1, 256], strides = [1, 1]} : vector<4x256xf32> to vector<1x256xf32>
    %150 = vector.broadcast %148 : vector<8x1xf32> to vector<8x256xf32>
    %151 = vector.broadcast %149 : vector<1x256xf32> to vector<8x256xf32>
    %152 = arith.mulf %150, %151 : vector<8x256xf32>
    %153 = arith.addf %147, %152 : vector<8x256xf32>
    %154 = vector.extract_strided_slice %2 {offsets = [0, 22], sizes = [8, 1], strides = [1, 1]} : vector<8x36xf32> to vector<8x1xf32>
    %155 = vector.extract_strided_slice %142 {offsets = [2, 0], sizes = [1, 256], strides = [1, 1]} : vector<4x256xf32> to vector<1x256xf32>
    %156 = vector.broadcast %154 : vector<8x1xf32> to vector<8x256xf32>
    %157 = vector.broadcast %155 : vector<1x256xf32> to vector<8x256xf32>
    %158 = arith.mulf %156, %157 : vector<8x256xf32>
    %159 = arith.addf %153, %158 : vector<8x256xf32>
    %160 = vector.extract_strided_slice %2 {offsets = [0, 23], sizes = [8, 1], strides = [1, 1]} : vector<8x36xf32> to vector<8x1xf32>
    %161 = vector.extract_strided_slice %142 {offsets = [3, 0], sizes = [1, 256], strides = [1, 1]} : vector<4x256xf32> to vector<1x256xf32>
    %162 = vector.broadcast %160 : vector<8x1xf32> to vector<8x256xf32>
    %163 = vector.broadcast %161 : vector<1x256xf32> to vector<8x256xf32>
    %164 = arith.mulf %162, %163 : vector<8x256xf32>
    %165 = arith.addf %159, %164 : vector<8x256xf32>
    %c5 = arith.constant 5 : index
    %c0_11 = arith.constant 0 : index
    %166 = vector.load %arg4[%c5, %c0_11] : memref<9x256xf32, #tpu.memory_space<vmem>>, vector<1x256xf32>
    %167 = vector.broadcast %166 : vector<1x256xf32> to vector<8x256xf32>
    %168 = arith.mulf %165, %167 : vector<8x256xf32>
    %169 = arith.addf %141, %168 : vector<8x256xf32>
    %c241_i32 = arith.constant 241 : i32
    %170 = tpu.dynamic_rotate %1 by %c241_i32 dim 1 : vector<4x256xf32>, i32 -> vector<4x256xf32>
    %171 = vector.extract_strided_slice %2 {offsets = [0, 24], sizes = [8, 1], strides = [1, 1]} : vector<8x36xf32> to vector<8x1xf32>
    %172 = vector.extract_strided_slice %170 {offsets = [0, 0], sizes = [1, 256], strides = [1, 1]} : vector<4x256xf32> to vector<1x256xf32>
    %173 = vector.broadcast %171 : vector<8x1xf32> to vector<8x256xf32>
    %174 = vector.broadcast %172 : vector<1x256xf32> to vector<8x256xf32>
    %175 = arith.mulf %173, %174 : vector<8x256xf32>
    %176 = vector.extract_strided_slice %2 {offsets = [0, 25], sizes = [8, 1], strides = [1, 1]} : vector<8x36xf32> to vector<8x1xf32>
    %177 = vector.extract_strided_slice %170 {offsets = [1, 0], sizes = [1, 256], strides = [1, 1]} : vector<4x256xf32> to vector<1x256xf32>
    %178 = vector.broadcast %176 : vector<8x1xf32> to vector<8x256xf32>
    %179 = vector.broadcast %177 : vector<1x256xf32> to vector<8x256xf32>
    %180 = arith.mulf %178, %179 : vector<8x256xf32>
    %181 = arith.addf %175, %180 : vector<8x256xf32>
    %182 = vector.extract_strided_slice %2 {offsets = [0, 26], sizes = [8, 1], strides = [1, 1]} : vector<8x36xf32> to vector<8x1xf32>
    %183 = vector.extract_strided_slice %170 {offsets = [2, 0], sizes = [1, 256], strides = [1, 1]} : vector<4x256xf32> to vector<1x256xf32>
    %184 = vector.broadcast %182 : vector<8x1xf32> to vector<8x256xf32>
    %185 = vector.broadcast %183 : vector<1x256xf32> to vector<8x256xf32>
    %186 = arith.mulf %184, %185 : vector<8x256xf32>
    %187 = arith.addf %181, %186 : vector<8x256xf32>
    %188 = vector.extract_strided_slice %2 {offsets = [0, 27], sizes = [8, 1], strides = [1, 1]} : vector<8x36xf32> to vector<8x1xf32>
    %189 = vector.extract_strided_slice %170 {offsets = [3, 0], sizes = [1, 256], strides = [1, 1]} : vector<4x256xf32> to vector<1x256xf32>
    %190 = vector.broadcast %188 : vector<8x1xf32> to vector<8x256xf32>
    %191 = vector.broadcast %189 : vector<1x256xf32> to vector<8x256xf32>
    %192 = arith.mulf %190, %191 : vector<8x256xf32>
    %193 = arith.addf %187, %192 : vector<8x256xf32>
    %c6 = arith.constant 6 : index
    %c0_12 = arith.constant 0 : index
    %194 = vector.load %arg4[%c6, %c0_12] : memref<9x256xf32, #tpu.memory_space<vmem>>, vector<1x256xf32>
    %195 = vector.broadcast %194 : vector<1x256xf32> to vector<8x256xf32>
    %196 = arith.mulf %193, %195 : vector<8x256xf32>
    %197 = arith.addf %169, %196 : vector<8x256xf32>
    %c240_i32 = arith.constant 240 : i32
    %198 = tpu.dynamic_rotate %1 by %c240_i32 dim 1 : vector<4x256xf32>, i32 -> vector<4x256xf32>
    %199 = vector.extract_strided_slice %2 {offsets = [0, 28], sizes = [8, 1], strides = [1, 1]} : vector<8x36xf32> to vector<8x1xf32>
    %200 = vector.extract_strided_slice %198 {offsets = [0, 0], sizes = [1, 256], strides = [1, 1]} : vector<4x256xf32> to vector<1x256xf32>
    %201 = vector.broadcast %199 : vector<8x1xf32> to vector<8x256xf32>
    %202 = vector.broadcast %200 : vector<1x256xf32> to vector<8x256xf32>
    %203 = arith.mulf %201, %202 : vector<8x256xf32>
    %204 = vector.extract_strided_slice %2 {offsets = [0, 29], sizes = [8, 1], strides = [1, 1]} : vector<8x36xf32> to vector<8x1xf32>
    %205 = vector.extract_strided_slice %198 {offsets = [1, 0], sizes = [1, 256], strides = [1, 1]} : vector<4x256xf32> to vector<1x256xf32>
    %206 = vector.broadcast %204 : vector<8x1xf32> to vector<8x256xf32>
    %207 = vector.broadcast %205 : vector<1x256xf32> to vector<8x256xf32>
    %208 = arith.mulf %206, %207 : vector<8x256xf32>
    %209 = arith.addf %203, %208 : vector<8x256xf32>
    %210 = vector.extract_strided_slice %2 {offsets = [0, 30], sizes = [8, 1], strides = [1, 1]} : vector<8x36xf32> to vector<8x1xf32>
    %211 = vector.extract_strided_slice %198 {offsets = [2, 0], sizes = [1, 256], strides = [1, 1]} : vector<4x256xf32> to vector<1x256xf32>
    %212 = vector.broadcast %210 : vector<8x1xf32> to vector<8x256xf32>
    %213 = vector.broadcast %211 : vector<1x256xf32> to vector<8x256xf32>
    %214 = arith.mulf %212, %213 : vector<8x256xf32>
    %215 = arith.addf %209, %214 : vector<8x256xf32>
    %216 = vector.extract_strided_slice %2 {offsets = [0, 31], sizes = [8, 1], strides = [1, 1]} : vector<8x36xf32> to vector<8x1xf32>
    %217 = vector.extract_strided_slice %198 {offsets = [3, 0], sizes = [1, 256], strides = [1, 1]} : vector<4x256xf32> to vector<1x256xf32>
    %218 = vector.broadcast %216 : vector<8x1xf32> to vector<8x256xf32>
    %219 = vector.broadcast %217 : vector<1x256xf32> to vector<8x256xf32>
    %220 = arith.mulf %218, %219 : vector<8x256xf32>
    %221 = arith.addf %215, %220 : vector<8x256xf32>
    %c7 = arith.constant 7 : index
    %c0_13 = arith.constant 0 : index
    %222 = vector.load %arg4[%c7, %c0_13] : memref<9x256xf32, #tpu.memory_space<vmem>>, vector<1x256xf32>
    %223 = vector.broadcast %222 : vector<1x256xf32> to vector<8x256xf32>
    %224 = arith.mulf %221, %223 : vector<8x256xf32>
    %225 = arith.addf %197, %224 : vector<8x256xf32>
    %c239_i32 = arith.constant 239 : i32
    %226 = tpu.dynamic_rotate %1 by %c239_i32 dim 1 : vector<4x256xf32>, i32 -> vector<4x256xf32>
    %227 = vector.extract_strided_slice %2 {offsets = [0, 32], sizes = [8, 1], strides = [1, 1]} : vector<8x36xf32> to vector<8x1xf32>
    %228 = vector.extract_strided_slice %226 {offsets = [0, 0], sizes = [1, 256], strides = [1, 1]} : vector<4x256xf32> to vector<1x256xf32>
    %229 = vector.broadcast %227 : vector<8x1xf32> to vector<8x256xf32>
    %230 = vector.broadcast %228 : vector<1x256xf32> to vector<8x256xf32>
    %231 = arith.mulf %229, %230 : vector<8x256xf32>
    %232 = vector.extract_strided_slice %2 {offsets = [0, 33], sizes = [8, 1], strides = [1, 1]} : vector<8x36xf32> to vector<8x1xf32>
    %233 = vector.extract_strided_slice %226 {offsets = [1, 0], sizes = [1, 256], strides = [1, 1]} : vector<4x256xf32> to vector<1x256xf32>
    %234 = vector.broadcast %232 : vector<8x1xf32> to vector<8x256xf32>
    %235 = vector.broadcast %233 : vector<1x256xf32> to vector<8x256xf32>
    %236 = arith.mulf %234, %235 : vector<8x256xf32>
    %237 = arith.addf %231, %236 : vector<8x256xf32>
    %238 = vector.extract_strided_slice %2 {offsets = [0, 34], sizes = [8, 1], strides = [1, 1]} : vector<8x36xf32> to vector<8x1xf32>
    %239 = vector.extract_strided_slice %226 {offsets = [2, 0], sizes = [1, 256], strides = [1, 1]} : vector<4x256xf32> to vector<1x256xf32>
    %240 = vector.broadcast %238 : vector<8x1xf32> to vector<8x256xf32>
    %241 = vector.broadcast %239 : vector<1x256xf32> to vector<8x256xf32>
    %242 = arith.mulf %240, %241 : vector<8x256xf32>
    %243 = arith.addf %237, %242 : vector<8x256xf32>
    %244 = vector.extract_strided_slice %2 {offsets = [0, 35], sizes = [8, 1], strides = [1, 1]} : vector<8x36xf32> to vector<8x1xf32>
    %245 = vector.extract_strided_slice %226 {offsets = [3, 0], sizes = [1, 256], strides = [1, 1]} : vector<4x256xf32> to vector<1x256xf32>
    %246 = vector.broadcast %244 : vector<8x1xf32> to vector<8x256xf32>
    %247 = vector.broadcast %245 : vector<1x256xf32> to vector<8x256xf32>
    %248 = arith.mulf %246, %247 : vector<8x256xf32>
    %249 = arith.addf %243, %248 : vector<8x256xf32>
    %c8 = arith.constant 8 : index
    %c0_14 = arith.constant 0 : index
    %250 = vector.load %arg4[%c8, %c0_14] : memref<9x256xf32, #tpu.memory_space<vmem>>, vector<1x256xf32>
    %251 = vector.broadcast %250 : vector<1x256xf32> to vector<8x256xf32>
    %252 = arith.mulf %249, %251 : vector<8x256xf32>
    %253 = arith.addf %225, %252 : vector<8x256xf32>
    %cst = arith.constant 0.000000e+00 : f32
    %254 = vector.broadcast %cst : f32 to vector<8x256xf32>
    %255 = arith.cmpf ogt, %253, %254 : vector<8x256xf32>
    %cst_15 = arith.constant 0.00999999977 : f32
    %256 = vector.broadcast %cst_15 : f32 to vector<8x256xf32>
    %257 = arith.mulf %256, %253 : vector<8x256xf32>
    %258 = arith.select %255, %253, %257 : vector<8x256xi1>, vector<8x256xf32>
    %c0_16 = arith.constant 0 : index
    %c0_17 = arith.constant 0 : index
    %c0_18 = arith.constant 0 : index
    %259 = vector.load %arg5[%c0_16, %c0_17, %c0_18] : memref<1x8x256xf32, #tpu.memory_space<vmem>>, vector<1x8x256xf32>
    %260 = vector.shape_cast %259 : vector<1x8x256xf32> to vector<8x256xf32>
    %261 = vector.shape_cast %258 : vector<8x256xf32> to vector<1x8x256xf32>
    tpu.vector_store %arg5[%c0_16, %c0_17, %c0_18], %261 {strides = array<i32>} : memref<1x8x256xf32, #tpu.memory_space<vmem>>, vector<1x8x256xf32>,
    return
  }
  func.func @transform_0(%arg0: i32) -> (i32, i32, i32) {
    %c0_i32 = arith.constant 0 : i32
    %c0_i32_0 = arith.constant 0 : i32
    %c0_i32_1 = arith.constant 0 : i32
    return %arg0, %c0_i32, %c0_i32_0 : i32, i32, i32
  }
  func.func @transform_1(%arg0: i32) -> (i32, i32) {
    %c0_i32 = arith.constant 0 : i32
    %c0_i32_0 = arith.constant 0 : i32
    %c0_i32_1 = arith.constant 0 : i32
    return %c0_i32, %c0_i32_0 : i32, i32
  }
  func.func @transform_2(%arg0: i32) -> (i32, i32) {
    %c0_i32 = arith.constant 0 : i32
    %c0_i32_0 = arith.constant 0 : i32
    %c0_i32_1 = arith.constant 0 : i32
    return %c0_i32, %c0_i32_0 : i32, i32
  }
  func.func @transform_3(%arg0: i32) -> (i32, i32) {
    %c0_i32 = arith.constant 0 : i32
    %c0_i32_0 = arith.constant 0 : i32
    %c0_i32_1 = arith.constant 0 : i32
    return %c0_i32, %c0_i32_0 : i32, i32
  }
  func.func @transform_4(%arg0: i32) -> (i32, i32, i32) {
    %c0_i32 = arith.constant 0 : i32
    %c0_i32_0 = arith.constant 0 : i32
    %c0_i32_1 = arith.constant 0 : i32
    return %arg0, %c0_i32, %c0_i32_0 : i32, i32, i32
  }
}

</mosaic_0001>

<llo_original>
// kernel: tpu_custom_call.1
$region0: #{tpu_custom_call.1}
  #allocation0 [shape = 'u32[]', space=smem, size = 0x4, offset = 0x4, fixed_abs, tag = 'smem constant byte address 0x4 - core index']
  #allocation1 [shape = 'u32[144,128]{1,0:T(1,128)}', space=vmem, size = 0x12000, scoped, tag = 'internal scratch']
  %s0 = inlined_call_operand.hbm [shape: f32[2,4,256], index: 0, kind: input, shape index: {}]
  %s1 = inlined_call_operand.vmem [shape: f32[8,36], index: 1, kind: input, shape index: {}]
  %s2 = inlined_call_operand.vmem [shape: f32[8,1], index: 2, kind: input, shape index: {}]
  %s3 = inlined_call_operand.hbm [shape: f32[9,256], index: 3, kind: input, shape index: {}]
  %s4 = inlined_call_operand.hbm [shape: f32[2,8,256], index: 4, kind: output, shape index: {}]
  %s5 = sld [smem:[#allocation0]]
  $region57: #{tpu_custom_call.1} parent=0
    _
  %s7 = ssub.s32 1, %s5
  %s8 = scalar_select 0, %s7, %s5
  $region1: #{tpu_custom_call.1} parent=0
    #allocation2 [shape = 'u8[8192]{0}', space=vmem, size = 0x2000, scoped, tag = 'input window, operand 0']
    #allocation3 [shape = 's32[2]{0}', space=sflag, size = 0x8, scoped, tag = 'scoped memory for tpu_custom_call.1']
    #allocation4 [shape = 's32[2]{0}', space=sflag, size = 0x8, scoped, tag = 'scoped memory for tpu_custom_call.1']
    #allocation5 [shape = 'u8[16384]{0}', space=vmem, size = 0x4000, scoped, tag = 'input window, operand 3, single buffered']
    #allocation6 [shape = 's32[1]{0}', space=sflag, size = 0x4, scoped, tag = 'scoped memory for tpu_custom_call.1']
    #allocation7 [shape = 'u8[16384]{0}', space=vmem, size = 0x4000, scoped, tag = 'output window, operand 0']
    %9 = vsyncpa [#allocation3], 0
    %s10 = scalar_lea.sflag [#allocation3], 1
    %11 = vsyncpa %s10, 0
    %12 = vsyncpa [#allocation6], 0
    %13 = vsyncpa [#allocation4], 0
    %s14 = scalar_lea.sflag [#allocation4], 1
    %15 = vsyncpa %s14, 0
    loop: start=0, step=1, limit=4
    $region2: #{tpu_custom_call.1} parent=1 // loop_pre_header
      _
    $region3: #{tpu_custom_call.1} parent=1 // loop_header
      %s17 = sphi 0, %s21
      %p18 = scmp.ge.s32.totalorder %s17, 4
      %s27 = sphi 0, %s29
      %s30 = sphi 0, %s27
      %s31 = sphi 0, %s30
      %s47 = sphi 0, %s31
      %s51 = sphi 0, %s51
      %s53 = sphi 0, %s51
      %s54 = sphi 0, %s53
      %s68 = sphi 0, %s54
      %s72 = sphi 0, %s72
      %s74 = sphi 0, %s72
      %s75 = sphi 0, %s74
      %s89 = sphi 0, %s75
      %s93 = sphi 0, %s93
      %s95 = sphi 0, %s93
      %s96 = sphi 0, %s95
      %s110 = sphi 0, %s96
      %s116 = sphi 0, %s118
      %s119 = sphi 0, %s116
      %s120 = sphi 0, %s119
      %s136 = sphi 0, %s120
    $region4: #{tpu_custom_call.1} parent=1 // loop_header_branch
      %20 = sbr.rel (%p18) target = $region8
    $region5: #{tpu_custom_call.1} parent=1 // loop_body
      %s22 = ssub.s32 %s17, 1
      %s23 = ssub.s32 %s17, 2
      %s24 = sadd.s32 %s17, 1
      %s25 = ssub.s32 %s17, %s24
      %p26 = scmp.eq.s32.totalorder %s25, 0
      %s28 = sadd.s32 %s27, 1
      %s29 = scalar_select %p26, %s27, %s28
      %p32 = pneg %p26
      %p33 = scmp.eq.s32.totalorder %s17, 1
      %p34 = por %p32, %p33
      %p35 = scmp.ne.s32.totalorder %s27, %s30
      %p36 = scmp.eq.s32.totalorder %s17, 0
      %p37 = por %p35, %p36
      %p38 = scmp.ne.s32.totalorder %s27, %s30
      %p39 = scmp.eq.s32.totalorder %s22, 1
      %p40 = por %p38, %p39
      %p41 = scmp.ne.s32.totalorder %s30, %s31
      %p42 = scmp.eq.s32.totalorder %s22, 0
      %p43 = por %p41, %p42
      %p44 = scmp.ne.s32.totalorder %s30, %s31
      %p45 = scmp.eq.s32.totalorder %s23, 1
      %p46 = por %p44, %p45
      %p48 = scmp.ne.s32.totalorder %s31, %s47
      %p49 = scmp.eq.s32.totalorder %s23, 0
      %p50 = por %p48, %p49
      %s52 = sadd.s32 %s51, 1
      %p55 = scmp.eq.s32.totalorder %s17, 1
      %p56 = scmp.ne.s32.totalorder %s51, %s53
      %p57 = scmp.eq.s32.totalorder %s17, 0
      %p58 = por %p56, %p57
      %p59 = scmp.ne.s32.totalorder %s51, %s53
      %p60 = scmp.eq.s32.totalorder %s22, 1
      %p61 = por %p59, %p60
      %p62 = scmp.ne.s32.totalorder %s53, %s54
      %p63 = scmp.eq.s32.totalorder %s22, 0
      %p64 = por %p62, %p63
      %p65 = scmp.ne.s32.totalorder %s53, %s54
      %p66 = scmp.eq.s32.totalorder %s23, 1
      %p67 = por %p65, %p66
      %p69 = scmp.ne.s32.totalorder %s54, %s68
      %p70 = scmp.eq.s32.totalorder %s23, 0
      %p71 = por %p69, %p70
      %s73 = sadd.s32 %s72, 1
      %p76 = scmp.eq.s32.totalorder %s17, 1
      %p77 = scmp.ne.s32.totalorder %s72, %s74
      %p78 = scmp.eq.s32.totalorder %s17, 0
      %p79 = por %p77, %p78
      %p80 = scmp.ne.s32.totalorder %s72, %s74
      %p81 = scmp.eq.s32.totalorder %s22, 1
      %p82 = por %p80, %p81
      %p83 = scmp.ne.s32.totalorder %s74, %s75
      %p84 = scmp.eq.s32.totalorder %s22, 0
      %p85 = por %p83, %p84
      %p86 = scmp.ne.s32.totalorder %s74, %s75
      %p87 = scmp.eq.s32.totalorder %s23, 1
      %p88 = por %p86, %p87
      %p90 = scmp.ne.s32.totalorder %s75, %s89
      %p91 = scmp.eq.s32.totalorder %s23, 0
      %p92 = por %p90, %p91
      %s94 = sadd.s32 %s93, 1
      %p97 = scmp.eq.s32.totalorder %s17, 1
      %p98 = scmp.ne.s32.totalorder %s93, %s95
      %p99 = scmp.eq.s32.totalorder %s17, 0
      %p100 = por %p98, %p99
      %p101 = scmp.ne.s32.totalorder %s93, %s95
      %p102 = scmp.eq.s32.totalorder %s22, 1
      %p103 = por %p101, %p102
      %p104 = scmp.ne.s32.totalorder %s95, %s96
      %p105 = scmp.eq.s32.totalorder %s22, 0
      %p106 = por %p104, %p105
      %p107 = scmp.ne.s32.totalorder %s95, %s96
      %p108 = scmp.eq.s32.totalorder %s23, 1
      %p109 = por %p107, %p108
      %p111 = scmp.ne.s32.totalorder %s96, %s110
      %p112 = scmp.eq.s32.totalorder %s23, 0
      %p113 = por %p111, %p112
      %s114 = ssub.s32 %s17, %s24
      %p115 = scmp.eq.s32.totalorder %s114, 0
      %s117 = sadd.s32 %s116, 1
      %s118 = scalar_select %p115, %s116, %s117
      %p121 = pneg %p115
      %p122 = scmp.eq.s32.totalorder %s17, 1
      %p123 = por %p121, %p122
      %p124 = scmp.ne.s32.totalorder %s116, %s119
      %p125 = scmp.eq.s32.totalorder %s17, 0
      %p126 = por %p124, %p125
      %p127 = scmp.ne.s32.totalorder %s116, %s119
      %p128 = scmp.eq.s32.totalorder %s22, 1
      %p129 = por %p127, %p128
      %p130 = scmp.ne.s32.totalorder %s119, %s120
      %p131 = scmp.eq.s32.totalorder %s22, 0
      %p132 = por %p130, %p131
      %p133 = scmp.ne.s32.totalorder %s119, %s120
      %p134 = scmp.eq.s32.totalorder %s23, 1
      %p135 = por %p133, %p134
      %p137 = scmp.ne.s32.totalorder %s120, %s136
      %p138 = scmp.eq.s32.totalorder %s23, 0
      %p139 = por %p137, %p138
      %p140 = scmp.le.s32.totalorder 1, %s17
      %p141 = scmp.lt.s32.totalorder %s17, 3
      %p142 = pnand %p140, %p141
      %p143 = pneg %p142
      // Predicated region
      $region9: #{tpu_custom_call.1} parent=5 // pred_check
        _
      $region10: #{tpu_custom_call.1} parent=5 // pred_check_branch
        %145 = sbr.rel (%p142) target = $region12
      $region11: #{tpu_custom_call.1} parent=5 // pred_region
        %s146 = ssub.s32 %s17, 1
        // Predicated region
        $region13: #{tpu_custom_call.1} parent=11 // pred_check
          %p147 = pneg %p64
        $region14: #{tpu_custom_call.1} parent=11 // pred_check_branch
          %149 = sbr.rel (%p147) target = $region16
        $region15: #{tpu_custom_call.1} parent=11 // pred_region
          _
        $region16: #{tpu_custom_call.1} parent=11 // pred_fallthru
          _
        // Predicated region
        $region17: #{tpu_custom_call.1} parent=11 // pred_check
          %p150 = pneg %p85
        $region18: #{tpu_custom_call.1} parent=11 // pred_check_branch
          %152 = sbr.rel (%p150) target = $region20
        $region19: #{tpu_custom_call.1} parent=11 // pred_region
          _
        $region20: #{tpu_custom_call.1} parent=11 // pred_fallthru
          _
        // Predicated region
        $region21: #{tpu_custom_call.1} parent=11 // pred_check
          %p153 = pneg %p106
        $region22: #{tpu_custom_call.1} parent=11 // pred_check_branch
          %155 = sbr.rel (%p153) target = $region24
        $region23: #{tpu_custom_call.1} parent=11 // pred_region
          %s157 = ssub.s32 512, 512
          %158 = vsyncadd [#allocation6], %s157
          %s159 = sshll.u32 [#allocation5], 4
          %s160 = int_to_ptr.vmem [resolvable:$true] %s159
          %165 = dma.hbm_to_vmem [thread:$0]  %s3, 512, %s160, [#allocation6], 256, 256, 16
        $region24: #{tpu_custom_call.1} parent=11 // pred_fallthru
          _
      $region12: #{tpu_custom_call.1} parent=5 // pred_fallthru
        _
      %p166 = scmp.lt.s32.totalorder %s17, 2
      // Predicated region
      $region25: #{tpu_custom_call.1} parent=5 // pred_check
        %p167 = pneg %p166
      $region26: #{tpu_custom_call.1} parent=5 // pred_check_branch
        %169 = sbr.rel (%p167) target = $region28
      $region27: #{tpu_custom_call.1} parent=5 // pred_region
        // Predicated region
        $region29: #{tpu_custom_call.1} parent=27 // pred_check
          %p170 = pneg %p37
        $region30: #{tpu_custom_call.1} parent=27 // pred_check_branch
          %172 = sbr.rel (%p170) target = $region32
        $region31: #{tpu_custom_call.1} parent=27 // pred_region
          %s173 = sand.u32 %s27, 1
          %s174 = scalar_lea.sflag [#allocation3], %s173
          %s175 = sand.u32 %s27, 1
          %s176 = smul.addr %s175, 8
          %s177 = scalar_lea.vmem [#allocation2], %s176
          %s179 = ssub.s32 128, 128
          %180 = vsyncadd %s174, %s179
          %s181 = smul.addr %s17, 2
          %s182 = smul.addr %s181, 64
          %s183 = scalar_lea.hbm %s0, %s182
          %s185 = sshll.u32 %s177, 4
          %s186 = int_to_ptr.vmem [resolvable:$true] %s185
          %188 = dma.hbm_to_vmem [thread:$0]  %s183, 128, %s186, %s174
        $region32: #{tpu_custom_call.1} parent=27 // pred_fallthru
          _
      $region28: #{tpu_custom_call.1} parent=5 // pred_fallthru
        _
      %p189 = scmp.le.s32.totalorder 1, %s17
      %p190 = scmp.lt.s32.totalorder %s17, 3
      %p191 = pnand %p189, %p190
      %p192 = pneg %p191
      // Predicated region
      $region33: #{tpu_custom_call.1} parent=5 // pred_check
        _
      $region34: #{tpu_custom_call.1} parent=5 // pred_check_branch
        %194 = sbr.rel (%p191) target = $region36
      $region35: #{tpu_custom_call.1} parent=5 // pred_region
        %s195 = ssub.s32 %s17, 1
        %s196 = sand.u32 %s30, 1
        %s197 = scalar_lea.sflag [#allocation3], %s196
        %s198 = sand.u32 %s30, 1
        %s199 = smul.addr %s198, 8
        %s200 = scalar_lea.vmem [#allocation2], %s199
        // Predicated region
        $region37: #{tpu_custom_call.1} parent=35 // pred_check
          %p201 = pneg %p43
        $region38: #{tpu_custom_call.1} parent=35 // pred_check_branch
          %203 = sbr.rel (%p201) target = $region40
        $region39: #{tpu_custom_call.1} parent=35 // pred_region
          %204 = dma.done %s197, 128
        $region40: #{tpu_custom_call.1} parent=35 // pred_fallthru
          _
        // Predicated region
        $region41: #{tpu_custom_call.1} parent=35 // pred_check
          %p205 = pneg %p106
        $region42: #{tpu_custom_call.1} parent=35 // pred_check_branch
          %207 = sbr.rel (%p205) target = $region44
        $region43: #{tpu_custom_call.1} parent=35 // pred_region
          %208 = dma.done [#allocation6], 512
        $region44: #{tpu_custom_call.1} parent=35 // pred_fallthru
          _
        %s209 = sand.u32 %s30, 1
        %s210 = scalar_lea.sflag [#allocation3], %s209
        %s211 = sand.u32 %s30, 1
        %s212 = smul.addr %s211, 8
        %s213 = scalar_lea.vmem [#allocation2], %s212
        %p214 = pneg %p43
        %p215 = pneg %p40
        %p216 = pneg %p64
        %p217 = pneg %p61
        %p218 = pneg %p85
        %p219 = pneg %p82
        %p220 = pneg %p106
        %p221 = pneg %p103
        %p222 = pneg %p132
        %p223 = pneg %p129
        %s224 = sand.u32 %s119, 1
        %s225 = scalar_lea.sflag [#allocation4], %s224
        %s226 = sand.u32 %s119, 1
        %s227 = smul.addr %s226, 16
        %s228 = scalar_lea.vmem [#allocation7], %s227
        %v229 = vld [vmem:[%s200] sm:$0xff]
        %v230 = vld [vmem:[%s1] sm:$0xff]
        %v231 = vld [vmem:[%s2] sm:$0xff]
        %233 = vset.pattern.permute.xlu0 0
        %234 = vperm.xlu0 %233, %v231
        %v235 = vpop.permute.xlu0 %234
        %v238 = vcombine.high %v229, %v229
        %240 = vrot.lane.b32.xlu0 %v229, 17
        %v241 = vpop.permute.xlu0 %240
        %242 = vrot.lane.b32.xlu0 %v238, 17
        %v243 = vpop.permute.xlu0 %242
        %v244 = vlaneseq
        %v245 = vand.u32 %v244, 127
        %vm246 = vcmp.lt.s32.totalorder %v245, 17
        %v247 = vsel %vm246, %v241, %v243
        %v248 = vsel %vm246, %v243, %v241
        %250 = vset.pattern.permute.xlu0 0
        %251 = vperm.xlu0 %250, %v230
        %v252 = vpop.permute.xlu0 %251
        %v254 = vlaneseq
        %v255 = vshrl.u32 %v254, 7
        %v256 = vsub.s32 0, %v255
        %v257 = vrot.slane %v248, %v256
        %v258 = vlaneseq
        %v259 = vshrl.u32 %v258, 7
        %v260 = vsub.s32 0, %v259
        %v261 = vrot.slane %v247, %v260
        %v262 = vmul.f32 %v252, %v257
        %v263 = vmul.f32 %v252, %v261
        %264 = vset.pattern.permute.xlu0 1
        %265 = vperm.xlu0 %264, %v230
        %v266 = vpop.permute.xlu0 %265
        %v268 = vlaneseq
        %v269 = vshrl.u32 %v268, 7
        %v270 = vsub.s32 1, %v269
        %v271 = vrot.slane %v248, %v270
        %v272 = vlaneseq
        %v273 = vshrl.u32 %v272, 7
        %v274 = vsub.s32 1, %v273
        %v275 = vrot.slane %v247, %v274
        %v276 = vmul.f32 %v266, %v271
        %v277 = vmul.f32 %v266, %v275
        %v278 = vadd.f32 %v262, %v276
        %v279 = vadd.f32 %v263, %v277
        %280 = vset.pattern.permute.xlu0 2
        %281 = vperm.xlu0 %280, %v230
        %v282 = vpop.permute.xlu0 %281
        %v284 = vlaneseq
        %v285 = vshrl.u32 %v284, 7
        %v286 = vsub.s32 2, %v285
        %v287 = vrot.slane %v248, %v286
        %v288 = vlaneseq
        %v289 = vshrl.u32 %v288, 7
        %v290 = vsub.s32 2, %v289
        %v291 = vrot.slane %v247, %v290
        %v292 = vmul.f32 %v282, %v287
        %v293 = vmul.f32 %v282, %v291
        %v294 = vadd.f32 %v278, %v292
        %v295 = vadd.f32 %v279, %v293
        %296 = vset.pattern.permute.xlu0 3
        %297 = vperm.xlu0 %296, %v230
        %v298 = vpop.permute.xlu0 %297
        %v300 = vlaneseq
        %v301 = vshrl.u32 %v300, 7
        %v302 = vsub.s32 3, %v301
        %v303 = vrot.slane %v248, %v302
        %v304 = vlaneseq
        %v305 = vshrl.u32 %v304, 7
        %v306 = vsub.s32 3, %v305
        %v307 = vrot.slane %v247, %v306
        %v308 = vmul.f32 %v298, %v303
        %v309 = vmul.f32 %v298, %v307
        %v310 = vadd.f32 %v294, %v308
        %v311 = vadd.f32 %v295, %v309
        %v312 = vld [vmem:[#allocation5] ss:$8 sm:$0x3]
        %v314 = vlaneseq
        %v315 = vshrl.u32 %v314, 7
        %v316 = vsub.s32 0, %v315
        %v317 = vrot.slane %v312, %v316
        %v318 = vlaneseq
        %v319 = vshrl.u32 %v318, 7
        %v320 = vsub.s32 1, %v319
        %v321 = vrot.slane %v312, %v320
        %v324 = vmul.f32 %v310, %v317
        %v325 = vmul.f32 %v311, %v321
        %v326 = vadd.f32 %v235, %v324
        %v327 = vadd.f32 %v235, %v325
        %328 = vrot.lane.b32.xlu0 %v229, 16
        %v329 = vpop.permute.xlu0 %328
        %330 = vrot.lane.b32.xlu0 %v238, 16
        %v331 = vpop.permute.xlu0 %330
        %vm332 = vcmp.lt.s32.totalorder %v245, 16
        %v333 = vsel %vm332, %v329, %v331
        %v334 = vsel %vm332, %v331, %v329
        %335 = vset.pattern.permute.xlu0 4
        %336 = vperm.xlu0 %335, %v230
        %v337 = vpop.permute.xlu0 %336
        %v339 = vlaneseq
        %v340 = vshrl.u32 %v339, 7
        %v341 = vsub.s32 0, %v340
        %v342 = vrot.slane %v334, %v341
        %v343 = vlaneseq
        %v344 = vshrl.u32 %v343, 7
        %v345 = vsub.s32 0, %v344
        %v346 = vrot.slane %v333, %v345
        %v347 = vmul.f32 %v337, %v342
        %v348 = vmul.f32 %v337, %v346
        %349 = vset.pattern.permute.xlu0 5
        %350 = vperm.xlu0 %349, %v230
        %v351 = vpop.permute.xlu0 %350
        %v353 = vlaneseq
        %v354 = vshrl.u32 %v353, 7
        %v355 = vsub.s32 1, %v354
        %v356 = vrot.slane %v334, %v355
        %v357 = vlaneseq
        %v358 = vshrl.u32 %v357, 7
        %v359 = vsub.s32 1, %v358
        %v360 = vrot.slane %v333, %v359
        %v361 = vmul.f32 %v351, %v356
        %v362 = vmul.f32 %v351, %v360
        %v363 = vadd.f32 %v347, %v361
        %v364 = vadd.f32 %v348, %v362
        %365 = vset.pattern.permute.xlu0 6
        %366 = vperm.xlu0 %365, %v230
        %v367 = vpop.permute.xlu0 %366
        %v369 = vlaneseq
        %v370 = vshrl.u32 %v369, 7
        %v371 = vsub.s32 2, %v370
        %v372 = vrot.slane %v334, %v371
        %v373 = vlaneseq
        %v374 = vshrl.u32 %v373, 7
        %v375 = vsub.s32 2, %v374
        %v376 = vrot.slane %v333, %v375
        %v377 = vmul.f32 %v367, %v372
        %v378 = vmul.f32 %v367, %v376
        %v379 = vadd.f32 %v363, %v377
        %v380 = vadd.f32 %v364, %v378
        %381 = vset.pattern.permute.xlu0 7
        %382 = vperm.xlu0 %381, %v230
        %v383 = vpop.permute.xlu0 %382
        %v385 = vlaneseq
        %v386 = vshrl.u32 %v385, 7
        %v387 = vsub.s32 3, %v386
        %v388 = vrot.slane %v334, %v387
        %v389 = vlaneseq
        %v390 = vshrl.u32 %v389, 7
        %v391 = vsub.s32 3, %v390
        %v392 = vrot.slane %v333, %v391
        %v393 = vmul.f32 %v383, %v388
        %v394 = vmul.f32 %v383, %v392
        %v395 = vadd.f32 %v379, %v393
        %v396 = vadd.f32 %v380, %v394
        %s397 = scalar_lea.vmem [#allocation5], 1
        %v398 = vld [vmem:[%s397] ss:$8 sm:$0x3]
        %v400 = vlaneseq
        %v401 = vshrl.u32 %v400, 7
        %v402 = vsub.s32 0, %v401
        %v403 = vrot.slane %v398, %v402
        %v404 = vlaneseq
        %v405 = vshrl.u32 %v404, 7
        %v406 = vsub.s32 1, %v405
        %v407 = vrot.slane %v398, %v406
        %v410 = vmul.f32 %v395, %v403
        %v411 = vmul.f32 %v396, %v407
        %v412 = vadd.f32 %v326, %v410
        %v413 = vadd.f32 %v327, %v411
        %414 = vrot.lane.b32.xlu0 %v229, 15
        %v415 = vpop.permute.xlu0 %414
        %416 = vrot.lane.b32.xlu0 %v238, 15
        %v417 = vpop.permute.xlu0 %416
        %vm418 = vcmp.lt.s32.totalorder %v245, 15
        %v419 = vsel %vm418, %v415, %v417
        %v420 = vsel %vm418, %v417, %v415
        %421 = vset.pattern.permute.xlu0 8
        %422 = vperm.xlu0 %421, %v230
        %v423 = vpop.permute.xlu0 %422
        %v425 = vlaneseq
        %v426 = vshrl.u32 %v425, 7
        %v427 = vsub.s32 0, %v426
        %v428 = vrot.slane %v420, %v427
        %v429 = vlaneseq
        %v430 = vshrl.u32 %v429, 7
        %v431 = vsub.s32 0, %v430
        %v432 = vrot.slane %v419, %v431
        %v433 = vmul.f32 %v423, %v428
        %v434 = vmul.f32 %v423, %v432
        %435 = vset.pattern.permute.xlu0 9
        %436 = vperm.xlu0 %435, %v230
        %v437 = vpop.permute.xlu0 %436
        %v439 = vlaneseq
        %v440 = vshrl.u32 %v439, 7
        %v441 = vsub.s32 1, %v440
        %v442 = vrot.slane %v420, %v441
        %v443 = vlaneseq
        %v444 = vshrl.u32 %v443, 7
        %v445 = vsub.s32 1, %v444
        %v446 = vrot.slane %v419, %v445
        %v447 = vmul.f32 %v437, %v442
        %v448 = vmul.f32 %v437, %v446
        %v449 = vadd.f32 %v433, %v447
        %v450 = vadd.f32 %v434, %v448
        %451 = vset.pattern.permute.xlu0 10
        %452 = vperm.xlu0 %451, %v230
        %v453 = vpop.permute.xlu0 %452
        %v455 = vlaneseq
        %v456 = vshrl.u32 %v455, 7
        %v457 = vsub.s32 2, %v456
        %v458 = vrot.slane %v420, %v457
        %v459 = vlaneseq
        %v460 = vshrl.u32 %v459, 7
        %v461 = vsub.s32 2, %v460
        %v462 = vrot.slane %v419, %v461
        %v463 = vmul.f32 %v453, %v458
        %v464 = vmul.f32 %v453, %v462
        %v465 = vadd.f32 %v449, %v463
        %v466 = vadd.f32 %v450, %v464
        %467 = vset.pattern.permute.xlu0 11
        %468 = vperm.xlu0 %467, %v230
        %v469 = vpop.permute.xlu0 %468
        %v471 = vlaneseq
        %v472 = vshrl.u32 %v471, 7
        %v473 = vsub.s32 3, %v472
        %v474 = vrot.slane %v420, %v473
        %v475 = vlaneseq
        %v476 = vshrl.u32 %v475, 7
        %v477 = vsub.s32 3, %v476
        %v478 = vrot.slane %v419, %v477
        %v479 = vmul.f32 %v469, %v474
        %v480 = vmul.f32 %v469, %v478
        %v481 = vadd.f32 %v465, %v479
        %v482 = vadd.f32 %v466, %v480
        %s483 = scalar_lea.vmem [#allocation5], 2
        %v484 = vld [vmem:[%s483] ss:$8 sm:$0x3]
        %v486 = vlaneseq
        %v487 = vshrl.u32 %v486, 7
        %v488 = vsub.s32 0, %v487
        %v489 = vrot.slane %v484, %v488
        %v490 = vlaneseq
        %v491 = vshrl.u32 %v490, 7
        %v492 = vsub.s32 1, %v491
        %v493 = vrot.slane %v484, %v492
        %v496 = vmul.f32 %v481, %v489
        %v497 = vmul.f32 %v482, %v493
        %v498 = vadd.f32 %v412, %v496
        %v499 = vadd.f32 %v413, %v497
        %500 = vrot.lane.b32.xlu0 %v229, 1
        %v501 = vpop.permute.xlu0 %500
        %502 = vrot.lane.b32.xlu0 %v238, 1
        %v503 = vpop.permute.xlu0 %502
        %vm504 = vcmp.lt.s32.totalorder %v245, 1
        %v505 = vsel %vm504, %v501, %v503
        %v506 = vsel %vm504, %v503, %v501
        %507 = vset.pattern.permute.xlu0 12
        %508 = vperm.xlu0 %507, %v230
        %v509 = vpop.permute.xlu0 %508
        %v511 = vlaneseq
        %v512 = vshrl.u32 %v511, 7
        %v513 = vsub.s32 0, %v512
        %v514 = vrot.slane %v506, %v513
        %v515 = vlaneseq
        %v516 = vshrl.u32 %v515, 7
        %v517 = vsub.s32 0, %v516
        %v518 = vrot.slane %v505, %v517
        %v519 = vmul.f32 %v509, %v514
        %v520 = vmul.f32 %v509, %v518
        %521 = vset.pattern.permute.xlu0 13
        %522 = vperm.xlu0 %521, %v230
        %v523 = vpop.permute.xlu0 %522
        %v525 = vlaneseq
        %v526 = vshrl.u32 %v525, 7
        %v527 = vsub.s32 1, %v526
        %v528 = vrot.slane %v506, %v527
        %v529 = vlaneseq
        %v530 = vshrl.u32 %v529, 7
        %v531 = vsub.s32 1, %v530
        %v532 = vrot.slane %v505, %v531
        %v533 = vmul.f32 %v523, %v528
        %v534 = vmul.f32 %v523, %v532
        %v535 = vadd.f32 %v519, %v533
        %v536 = vadd.f32 %v520, %v534
        %537 = vset.pattern.permute.xlu0 14
        %538 = vperm.xlu0 %537, %v230
        %v539 = vpop.permute.xlu0 %538
        %v541 = vlaneseq
        %v542 = vshrl.u32 %v541, 7
        %v543 = vsub.s32 2, %v542
        %v544 = vrot.slane %v506, %v543
        %v545 = vlaneseq
        %v546 = vshrl.u32 %v545, 7
        %v547 = vsub.s32 2, %v546
        %v548 = vrot.slane %v505, %v547
        %v549 = vmul.f32 %v539, %v544
        %v550 = vmul.f32 %v539, %v548
        %v551 = vadd.f32 %v535, %v549
        %v552 = vadd.f32 %v536, %v550
        %553 = vset.pattern.permute.xlu0 15
        %554 = vperm.xlu0 %553, %v230
        %v555 = vpop.permute.xlu0 %554
        %v557 = vlaneseq
        %v558 = vshrl.u32 %v557, 7
        %v559 = vsub.s32 3, %v558
        %v560 = vrot.slane %v506, %v559
        %v561 = vlaneseq
        %v562 = vshrl.u32 %v561, 7
        %v563 = vsub.s32 3, %v562
        %v564 = vrot.slane %v505, %v563
        %v565 = vmul.f32 %v555, %v560
        %v566 = vmul.f32 %v555, %v564
        %v567 = vadd.f32 %v551, %v565
        %v568 = vadd.f32 %v552, %v566
        %s569 = scalar_lea.vmem [#allocation5], 3
        %v570 = vld [vmem:[%s569] ss:$8 sm:$0x3]
        %v572 = vlaneseq
        %v573 = vshrl.u32 %v572, 7
        %v574 = vsub.s32 0, %v573
        %v575 = vrot.slane %v570, %v574
        %v576 = vlaneseq
        %v577 = vshrl.u32 %v576, 7
        %v578 = vsub.s32 1, %v577
        %v579 = vrot.slane %v570, %v578
        %v582 = vmul.f32 %v567, %v575
        %v583 = vmul.f32 %v568, %v579
        %v584 = vadd.f32 %v498, %v582
        %v585 = vadd.f32 %v499, %v583
        %586 = vset.pattern.permute.xlu0 16
        %587 = vperm.xlu0 %586, %v230
        %v588 = vpop.permute.xlu0 %587
        %v590 = vlaneseq
        %v591 = vshrl.u32 %v590, 7
        %v592 = vsub.s32 0, %v591
        %v593 = vrot.slane %v229, %v592
        %v594 = vlaneseq
        %v595 = vshrl.u32 %v594, 7
        %v596 = vsub.s32 4, %v595
        %v597 = vrot.slane %v229, %v596
        %v600 = vlaneseq
        %v601 = vshrl.u32 %v600, 7
        %v602 = vsub.s32 0, %v601
        %v603 = vrot.slane %v593, %v602
        %v604 = vlaneseq
        %v605 = vshrl.u32 %v604, 7
        %v606 = vsub.s32 0, %v605
        %v607 = vrot.slane %v597, %v606
        %v608 = vmul.f32 %v588, %v603
        %v609 = vmul.f32 %v588, %v607
        %610 = vset.pattern.permute.xlu0 17
        %611 = vperm.xlu0 %610, %v230
        %v612 = vpop.permute.xlu0 %611
        %v614 = vlaneseq
        %v615 = vshrl.u32 %v614, 7
        %v616 = vsub.s32 1, %v615
        %v617 = vrot.slane %v229, %v616
        %v618 = vlaneseq
        %v619 = vshrl.u32 %v618, 7
        %v620 = vsub.s32 5, %v619
        %v621 = vrot.slane %v229, %v620
        %v624 = vlaneseq
        %v625 = vshrl.u32 %v624, 7
        %v626 = vsub.s32 1, %v625
        %v627 = vrot.slane %v617, %v626
        %v628 = vlaneseq
        %v629 = vshrl.u32 %v628, 7
        %v630 = vsub.s32 1, %v629
        %v631 = vrot.slane %v621, %v630
        %v632 = vmul.f32 %v612, %v627
        %v633 = vmul.f32 %v612, %v631
        %v634 = vadd.f32 %v608, %v632
        %v635 = vadd.f32 %v609, %v633
        %636 = vset.pattern.permute.xlu0 18
        %637 = vperm.xlu0 %636, %v230
        %v638 = vpop.permute.xlu0 %637
        %v640 = vlaneseq
        %v641 = vshrl.u32 %v640, 7
        %v642 = vsub.s32 2, %v641
        %v643 = vrot.slane %v229, %v642
        %v644 = vlaneseq
        %v645 = vshrl.u32 %v644, 7
        %v646 = vsub.s32 6, %v645
        %v647 = vrot.slane %v229, %v646
        %v650 = vlaneseq
        %v651 = vshrl.u32 %v650, 7
        %v652 = vsub.s32 2, %v651
        %v653 = vrot.slane %v643, %v652
        %v654 = vlaneseq
        %v655 = vshrl.u32 %v654, 7
        %v656 = vsub.s32 2, %v655
        %v657 = vrot.slane %v647, %v656
        %v658 = vmul.f32 %v638, %v653
        %v659 = vmul.f32 %v638, %v657
        %v660 = vadd.f32 %v634, %v658
        %v661 = vadd.f32 %v635, %v659
        %662 = vset.pattern.permute.xlu0 19
        %663 = vperm.xlu0 %662, %v230
        %v664 = vpop.permute.xlu0 %663
        %v666 = vlaneseq
        %v667 = vshrl.u32 %v666, 7
        %v668 = vsub.s32 3, %v667
        %v669 = vrot.slane %v229, %v668
        %v670 = vlaneseq
        %v671 = vshrl.u32 %v670, 7
        %v672 = vsub.s32 7, %v671
        %v673 = vrot.slane %v229, %v672
        %v676 = vlaneseq
        %v677 = vshrl.u32 %v676, 7
        %v678 = vsub.s32 3, %v677
        %v679 = vrot.slane %v669, %v678
        %v680 = vlaneseq
        %v681 = vshrl.u32 %v680, 7
        %v682 = vsub.s32 3, %v681
        %v683 = vrot.slane %v673, %v682
        %v684 = vmul.f32 %v664, %v679
        %v685 = vmul.f32 %v664, %v683
        %v686 = vadd.f32 %v660, %v684
        %v687 = vadd.f32 %v661, %v685
        %v688 = vadd.f32 %v584, %v686
        %v689 = vadd.f32 %v585, %v687
        %690 = vrot.lane.b32.xlu0 %v229, 127
        %v691 = vpop.permute.xlu0 %690
        %692 = vrot.lane.b32.xlu0 %v238, 127
        %v693 = vpop.permute.xlu0 %692
        %vm694 = vcmp.lt.s32.totalorder %v245, 127
        %v695 = vsel %vm694, %v691, %v693
        %v696 = vsel %vm694, %v693, %v691
        %697 = vset.pattern.permute.xlu0 20
        %698 = vperm.xlu0 %697, %v230
        %v699 = vpop.permute.xlu0 %698
        %v701 = vlaneseq
        %v702 = vshrl.u32 %v701, 7
        %v703 = vsub.s32 0, %v702
        %v704 = vrot.slane %v695, %v703
        %v705 = vlaneseq
        %v706 = vshrl.u32 %v705, 7
        %v707 = vsub.s32 0, %v706
        %v708 = vrot.slane %v696, %v707
        %v709 = vmul.f32 %v699, %v704
        %v710 = vmul.f32 %v699, %v708
        %711 = vset.pattern.permute.xlu0 21
        %712 = vperm.xlu0 %711, %v230
        %v713 = vpop.permute.xlu0 %712
        %v715 = vlaneseq
        %v716 = vshrl.u32 %v715, 7
        %v717 = vsub.s32 1, %v716
        %v718 = vrot.slane %v695, %v717
        %v719 = vlaneseq
        %v720 = vshrl.u32 %v719, 7
        %v721 = vsub.s32 1, %v720
        %v722 = vrot.slane %v696, %v721
        %v723 = vmul.f32 %v713, %v718
        %v724 = vmul.f32 %v713, %v722
        %v725 = vadd.f32 %v709, %v723
        %v726 = vadd.f32 %v710, %v724
        %727 = vset.pattern.permute.xlu0 22
        %728 = vperm.xlu0 %727, %v230
        %v729 = vpop.permute.xlu0 %728
        %v731 = vlaneseq
        %v732 = vshrl.u32 %v731, 7
        %v733 = vsub.s32 2, %v732
        %v734 = vrot.slane %v695, %v733
        %v735 = vlaneseq
        %v736 = vshrl.u32 %v735, 7
        %v737 = vsub.s32 2, %v736
        %v738 = vrot.slane %v696, %v737
        %v739 = vmul.f32 %v729, %v734
        %v740 = vmul.f32 %v729, %v738
        %v741 = vadd.f32 %v725, %v739
        %v742 = vadd.f32 %v726, %v740
        %743 = vset.pattern.permute.xlu0 23
        %744 = vperm.xlu0 %743, %v230
        %v745 = vpop.permute.xlu0 %744
        %v747 = vlaneseq
        %v748 = vshrl.u32 %v747, 7
        %v749 = vsub.s32 3, %v748
        %v750 = vrot.slane %v695, %v749
        %v751 = vlaneseq
        %v752 = vshrl.u32 %v751, 7
        %v753 = vsub.s32 3, %v752
        %v754 = vrot.slane %v696, %v753
        %v755 = vmul.f32 %v745, %v750
        %v756 = vmul.f32 %v745, %v754
        %v757 = vadd.f32 %v741, %v755
        %v758 = vadd.f32 %v742, %v756
        %s759 = scalar_lea.vmem [#allocation5], 5
        %v760 = vld [vmem:[%s759] ss:$8 sm:$0x3]
        %v762 = vlaneseq
        %v763 = vshrl.u32 %v762, 7
        %v764 = vsub.s32 0, %v763
        %v765 = vrot.slane %v760, %v764
        %v766 = vlaneseq
        %v767 = vshrl.u32 %v766, 7
        %v768 = vsub.s32 1, %v767
        %v769 = vrot.slane %v760, %v768
        %v772 = vmul.f32 %v757, %v765
        %v773 = vmul.f32 %v758, %v769
        %v774 = vadd.f32 %v688, %v772
        %v775 = vadd.f32 %v689, %v773
        %776 = vrot.lane.b32.xlu0 %v229, 113
        %v777 = vpop.permute.xlu0 %776
        %778 = vrot.lane.b32.xlu0 %v238, 113
        %v779 = vpop.permute.xlu0 %778
        %vm780 = vcmp.lt.s32.totalorder %v245, 113
        %v781 = vsel %vm780, %v777, %v779
        %v782 = vsel %vm780, %v779, %v777
        %783 = vset.pattern.permute.xlu0 24
        %784 = vperm.xlu0 %783, %v230
        %v785 = vpop.permute.xlu0 %784
        %v787 = vlaneseq
        %v788 = vshrl.u32 %v787, 7
        %v789 = vsub.s32 0, %v788
        %v790 = vrot.slane %v781, %v789
        %v791 = vlaneseq
        %v792 = vshrl.u32 %v791, 7
        %v793 = vsub.s32 0, %v792
        %v794 = vrot.slane %v782, %v793
        %v795 = vmul.f32 %v785, %v790
        %v796 = vmul.f32 %v785, %v794
        %797 = vset.pattern.permute.xlu0 25
        %798 = vperm.xlu0 %797, %v230
        %v799 = vpop.permute.xlu0 %798
        %v801 = vlaneseq
        %v802 = vshrl.u32 %v801, 7
        %v803 = vsub.s32 1, %v802
        %v804 = vrot.slane %v781, %v803
        %v805 = vlaneseq
        %v806 = vshrl.u32 %v805, 7
        %v807 = vsub.s32 1, %v806
        %v808 = vrot.slane %v782, %v807
        %v809 = vmul.f32 %v799, %v804
        %v810 = vmul.f32 %v799, %v808
        %v811 = vadd.f32 %v795, %v809
        %v812 = vadd.f32 %v796, %v810
        %813 = vset.pattern.permute.xlu0 26
        %814 = vperm.xlu0 %813, %v230
        %v815 = vpop.permute.xlu0 %814
        %v817 = vlaneseq
        %v818 = vshrl.u32 %v817, 7
        %v819 = vsub.s32 2, %v818
        %v820 = vrot.slane %v781, %v819
        %v821 = vlaneseq
        %v822 = vshrl.u32 %v821, 7
        %v823 = vsub.s32 2, %v822
        %v824 = vrot.slane %v782, %v823
        %v825 = vmul.f32 %v815, %v820
        %v826 = vmul.f32 %v815, %v824
        %v827 = vadd.f32 %v811, %v825
        %v828 = vadd.f32 %v812, %v826
        %829 = vset.pattern.permute.xlu0 27
        %830 = vperm.xlu0 %829, %v230
        %v831 = vpop.permute.xlu0 %830
        %v833 = vlaneseq
        %v834 = vshrl.u32 %v833, 7
        %v835 = vsub.s32 3, %v834
        %v836 = vrot.slane %v781, %v835
        %v837 = vlaneseq
        %v838 = vshrl.u32 %v837, 7
        %v839 = vsub.s32 3, %v838
        %v840 = vrot.slane %v782, %v839
        %v841 = vmul.f32 %v831, %v836
        %v842 = vmul.f32 %v831, %v840
        %v843 = vadd.f32 %v827, %v841
        %v844 = vadd.f32 %v828, %v842
        %s845 = scalar_lea.vmem [#allocation5], 6
        %v846 = vld [vmem:[%s845] ss:$8 sm:$0x3]
        %v848 = vlaneseq
        %v849 = vshrl.u32 %v848, 7
        %v850 = vsub.s32 0, %v849
        %v851 = vrot.slane %v846, %v850
        %v852 = vlaneseq
        %v853 = vshrl.u32 %v852, 7
        %v854 = vsub.s32 1, %v853
        %v855 = vrot.slane %v846, %v854
        %v858 = vmul.f32 %v843, %v851
        %v859 = vmul.f32 %v844, %v855
        %v860 = vadd.f32 %v774, %v858
        %v861 = vadd.f32 %v775, %v859
        %862 = vrot.lane.b32.xlu0 %v229, 112
        %v863 = vpop.permute.xlu0 %862
        %864 = vrot.lane.b32.xlu0 %v238, 112
        %v865 = vpop.permute.xlu0 %864
        %vm866 = vcmp.lt.s32.totalorder %v245, 112
        %v867 = vsel %vm866, %v863, %v865
        %v868 = vsel %vm866, %v865, %v863
        %869 = vset.pattern.permute.xlu0 28
        %870 = vperm.xlu0 %869, %v230
        %v871 = vpop.permute.xlu0 %870
        %v873 = vlaneseq
        %v874 = vshrl.u32 %v873, 7
        %v875 = vsub.s32 0, %v874
        %v876 = vrot.slane %v867, %v875
        %v877 = vlaneseq
        %v878 = vshrl.u32 %v877, 7
        %v879 = vsub.s32 0, %v878
        %v880 = vrot.slane %v868, %v879
        %v881 = vmul.f32 %v871, %v876
        %v882 = vmul.f32 %v871, %v880
        %883 = vset.pattern.permute.xlu0 29
        %884 = vperm.xlu0 %883, %v230
        %v885 = vpop.permute.xlu0 %884
        %v887 = vlaneseq
        %v888 = vshrl.u32 %v887, 7
        %v889 = vsub.s32 1, %v888
        %v890 = vrot.slane %v867, %v889
        %v891 = vlaneseq
        %v892 = vshrl.u32 %v891, 7
        %v893 = vsub.s32 1, %v892
        %v894 = vrot.slane %v868, %v893
        %v895 = vmul.f32 %v885, %v890
        %v896 = vmul.f32 %v885, %v894
        %v897 = vadd.f32 %v881, %v895
        %v898 = vadd.f32 %v882, %v896
        %899 = vset.pattern.permute.xlu0 30
        %900 = vperm.xlu0 %899, %v230
        %v901 = vpop.permute.xlu0 %900
        %v903 = vlaneseq
        %v904 = vshrl.u32 %v903, 7
        %v905 = vsub.s32 2, %v904
        %v906 = vrot.slane %v867, %v905
        %v907 = vlaneseq
        %v908 = vshrl.u32 %v907, 7
        %v909 = vsub.s32 2, %v908
        %v910 = vrot.slane %v868, %v909
        %v911 = vmul.f32 %v901, %v906
        %v912 = vmul.f32 %v901, %v910
        %v913 = vadd.f32 %v897, %v911
        %v914 = vadd.f32 %v898, %v912
        %915 = vset.pattern.permute.xlu0 31
        %916 = vperm.xlu0 %915, %v230
        %v917 = vpop.permute.xlu0 %916
        %v919 = vlaneseq
        %v920 = vshrl.u32 %v919, 7
        %v921 = vsub.s32 3, %v920
        %v922 = vrot.slane %v867, %v921
        %v923 = vlaneseq
        %v924 = vshrl.u32 %v923, 7
        %v925 = vsub.s32 3, %v924
        %v926 = vrot.slane %v868, %v925
        %v927 = vmul.f32 %v917, %v922
        %v928 = vmul.f32 %v917, %v926
        %v929 = vadd.f32 %v913, %v927
        %v930 = vadd.f32 %v914, %v928
        %s931 = scalar_lea.vmem [#allocation5], 7
        %v932 = vld [vmem:[%s931] ss:$8 sm:$0x3]
        %v934 = vlaneseq
        %v935 = vshrl.u32 %v934, 7
        %v936 = vsub.s32 0, %v935
        %v937 = vrot.slane %v932, %v936
        %v938 = vlaneseq
        %v939 = vshrl.u32 %v938, 7
        %v940 = vsub.s32 1, %v939
        %v941 = vrot.slane %v932, %v940
        %v944 = vmul.f32 %v929, %v937
        %v945 = vmul.f32 %v930, %v941
        %v946 = vadd.f32 %v860, %v944
        %v947 = vadd.f32 %v861, %v945
        %948 = vrot.lane.b32.xlu0 %v229, 111
        %v949 = vpop.permute.xlu0 %948
        %950 = vrot.lane.b32.xlu0 %v238, 111
        %v951 = vpop.permute.xlu0 %950
        %vm952 = vcmp.lt.s32.totalorder %v245, 111
        %v953 = vsel %vm952, %v949, %v951
        %v954 = vsel %vm952, %v951, %v949
        %955 = vset.pattern.permute.xlu0 32
        %956 = vperm.xlu0 %955, %v230
        %v957 = vpop.permute.xlu0 %956
        %v959 = vlaneseq
        %v960 = vshrl.u32 %v959, 7
        %v961 = vsub.s32 0, %v960
        %v962 = vrot.slane %v953, %v961
        %v963 = vlaneseq
        %v964 = vshrl.u32 %v963, 7
        %v965 = vsub.s32 0, %v964
        %v966 = vrot.slane %v954, %v965
        %v967 = vmul.f32 %v957, %v962
        %v968 = vmul.f32 %v957, %v966
        %969 = vset.pattern.permute.xlu0 33
        %970 = vperm.xlu0 %969, %v230
        %v971 = vpop.permute.xlu0 %970
        %v973 = vlaneseq
        %v974 = vshrl.u32 %v973, 7
        %v975 = vsub.s32 1, %v974
        %v976 = vrot.slane %v953, %v975
        %v977 = vlaneseq
        %v978 = vshrl.u32 %v977, 7
        %v979 = vsub.s32 1, %v978
        %v980 = vrot.slane %v954, %v979
        %v981 = vmul.f32 %v971, %v976
        %v982 = vmul.f32 %v971, %v980
        %v983 = vadd.f32 %v967, %v981
        %v984 = vadd.f32 %v968, %v982
        %985 = vset.pattern.permute.xlu0 34
        %986 = vperm.xlu0 %985, %v230
        %v987 = vpop.permute.xlu0 %986
        %v989 = vlaneseq
        %v990 = vshrl.u32 %v989, 7
        %v991 = vsub.s32 2, %v990
        %v992 = vrot.slane %v953, %v991
        %v993 = vlaneseq
        %v994 = vshrl.u32 %v993, 7
        %v995 = vsub.s32 2, %v994
        %v996 = vrot.slane %v954, %v995
        %v997 = vmul.f32 %v987, %v992
        %v998 = vmul.f32 %v987, %v996
        %v999 = vadd.f32 %v983, %v997
        %v1000 = vadd.f32 %v984, %v998
        %1001 = vset.pattern.permute.xlu0 35
        %1002 = vperm.xlu0 %1001, %v230
        %v1003 = vpop.permute.xlu0 %1002
        %v1005 = vlaneseq
        %v1006 = vshrl.u32 %v1005, 7
        %v1007 = vsub.s32 3, %v1006
        %v1008 = vrot.slane %v953, %v1007
        %v1009 = vlaneseq
        %v1010 = vshrl.u32 %v1009, 7
        %v1011 = vsub.s32 3, %v1010
        %v1012 = vrot.slane %v954, %v1011
        %v1013 = vmul.f32 %v1003, %v1008
        %v1014 = vmul.f32 %v1003, %v1012
        %v1015 = vadd.f32 %v999, %v1013
        %v1016 = vadd.f32 %v1000, %v1014
        %s1017 = scalar_lea.vmem [#allocation5], 16
        %v1018 = vld [vmem:[%s1017] ss:$8 sm:$0x3]
        %v1020 = vlaneseq
        %v1021 = vshrl.u32 %v1020, 7
        %v1022 = vsub.s32 0, %v1021
        %v1023 = vrot.slane %v1018, %v1022
        %v1024 = vlaneseq
        %v1025 = vshrl.u32 %v1024, 7
        %v1026 = vsub.s32 1, %v1025
        %v1027 = vrot.slane %v1018, %v1026
        %v1030 = vmul.f32 %v1015, %v1023
        %v1031 = vmul.f32 %v1016, %v1027
        %v1032 = vadd.f32 %v946, %v1030
        %v1033 = vadd.f32 %v947, %v1031
        %vm1034 = vcmp.gt.f32.partialorder %v1032, 0.0
        %vm1035 = vcmp.gt.f32.partialorder %v1033, 0.0
        %v1036 = vmul.f32 %v1032, 0.01
        %v1037 = vmul.f32 %v1033, 0.01
        %v1038 = vsel %vm1034, %v1032, %v1036
        %v1039 = vsel %vm1035, %v1033, %v1037
        %1040 = vst [vmem:[%s228] sm:$0xff] %v1038
        %1041 = vst [vmem:[%s228 + $0x8] sm:$0xff] %v1039
        %s1042 = sand.u32 %s119, 1
        %s1043 = scalar_lea.sflag [#allocation4], %s1042
        %s1044 = sand.u32 %s119, 1
        %s1045 = smul.addr %s1044, 16
        %s1046 = scalar_lea.vmem [#allocation7], %s1045
        // Predicated region
        $region45: #{tpu_custom_call.1} parent=35 // pred_check
          %p1047 = pneg %p129
        $region46: #{tpu_custom_call.1} parent=35 // pred_check_branch
          %1049 = sbr.rel (%p1047) target = $region48
        $region47: #{tpu_custom_call.1} parent=35 // pred_region
          %s1051 = ssub.s32 256, 256
          %1052 = vsyncadd %s1043, %s1051
          %s1053 = smul.addr %s22, 2
          %s1054 = smul.addr %s1053, 128
          %s1055 = scalar_lea.hbm %s4, %s1054
          %s1057 = sshll.u32 %s1046, 4
          %s1058 = int_to_ptr.vmem [resolvable:$true] %s1057
          %1060 = dma.vmem_to_hbm [thread:$0]  %s1058, 256, %s1055, %s1043
        $region48: #{tpu_custom_call.1} parent=35 // pred_fallthru
          _
      $region36: #{tpu_custom_call.1} parent=5 // pred_fallthru
        _
      %p1061 = scmp.le.s32.totalorder 2, %s17
      // Predicated region
      $region49: #{tpu_custom_call.1} parent=5 // pred_check
        %p1062 = pneg %p1061
      $region50: #{tpu_custom_call.1} parent=5 // pred_check_branch
        %1064 = sbr.rel (%p1062) target = $region52
      $region51: #{tpu_custom_call.1} parent=5 // pred_region
        %s1065 = ssub.s32 %s17, 2
        // Predicated region
        $region53: #{tpu_custom_call.1} parent=51 // pred_check
          %p1066 = pneg %p135
        $region54: #{tpu_custom_call.1} parent=51 // pred_check_branch
          %1068 = sbr.rel (%p1066) target = $region56
        $region55: #{tpu_custom_call.1} parent=51 // pred_region
          %s1069 = sand.u32 %s120, 1
          %s1070 = scalar_lea.sflag [#allocation4], %s1069
          %s1071 = sand.u32 %s120, 1
          %s1072 = smul.addr %s1071, 16
          %s1073 = scalar_lea.vmem [#allocation7], %s1072
          %1074 = dma.done %s1070, 256
        $region56: #{tpu_custom_call.1} parent=51 // pred_fallthru
          _
      $region52: #{tpu_custom_call.1} parent=5 // pred_fallthru
        _
    $region6: #{tpu_custom_call.1} parent=1 // loop_footer
      %s21 = sadd.s32 1, %s17
    $region7: #{tpu_custom_call.1} parent=1 // loop_footer_branch
      %16 = sbr.rel target = $region3
    $region8: #{tpu_custom_call.1} parent=1 // loop_exit
      _
    %1075 = vsyncpa [#allocation3], 1
    %s1076 = scalar_lea.sflag [#allocation3], 1
    %1077 = vsyncpa %s1076, 1
    %1078 = vsyncpa [#allocation6], 1
    %1079 = vsyncpa [#allocation4], 1
    %s1080 = scalar_lea.sflag [#allocation4], 1
    %1081 = vsyncpa %s1080, 1

</llo_original>
